<compile_context>
chip_gen: v5e
topology: v5e:2x2
jax: 0.10.0
libtpu: 0.0.40
codegen_flags: <defaults>
</compile_context>

<pallas_src>
import jax
import jax.numpy as jnp
from jax.experimental import pallas as pl
from jax.experimental.pallas import tpu as pltpu

BN_EPS = 1e-5
_X_TILE_BUDGET_BYTES = 4 * 1024 * 1024   # per pipeline buffer of the bf16 x tile


def _round_up(v, m):
    return ((v + m - 1) // m) * m


def _pad_to(a, shape):
    return jnp.pad(a, [(0, s - d) for d, s in zip(a.shape, shape)])


def image_classifier_forward(x_nchw, params):
    """Returns (f1, f2, y) like ImageClassifierWn2.forward (training-mode BatchNorm)."""
    wb, bb, w1, b1, bn_g, bn_b, v, hg, b2 = params
    B, C, H, W = x_nchw.shape
    HW = H * W
    F = wb.shape[1]
    D = w1.shape[1]
    K = v.shape[1]

    # ---- padded / lane-dense sizes ------------------------------------------------
    Bp = _round_up(max(B, 8), 8)      # sublane-dense batch
    Fp = _round_up(F, 128)            # lane-dense backbone features
    Dp = _round_up(D, 128)            # lane-dense bottleneck features
    Kp = _round_up(K, 128)            # lane-dense logits (avoids masked partial stores)

    # ---- channel tiling: biggest tile whose bf16 x block fits the per-buffer budget ----
    tc = _X_TILE_BUDGET_BYTES // (Bp * HW * 2)
    tc = max(8, (tc // 8) * 8)
    tc = min(tc, _round_up(C, 8))
    Cp = _round_up(C, tc)
    n_ct = Cp // tc

    # ---- operand prep (bf16 for the MXU inputs; zero padding is exact) -------------
    x = _pad_to(x_nchw.reshape(B, C, HW), (Bp, Cp, HW)).astype(jnp.bfloat16)
    wb_k = _pad_to(wb * (1.0 / HW), (Cp, Fp)).astype(jnp.bfloat16)   # fold GAP 1/HW scale
    bb_k = _pad_to(bb, (1, Fp)).astype(jnp.float32)
    w1_k = _pad_to(w1, (Fp, Dp)).astype(jnp.bfloat16)
    b1_k = _pad_to(b1, (1, Dp)).astype(jnp.float32)
    bn_g_k = _pad_to(bn_g, (1, Dp)).astype(jnp.float32)
    bn_b_k = _pad_to(bn_b, (1, Dp)).astype(jnp.float32)
    v_k = _pad_to(v, (Dp, Kp)).astype(jnp.float32)
    hg_k = _pad_to(hg, (1, Kp)).astype(jnp.float32)
    b2_k = _pad_to(b2, (1, Kp)).astype(jnp.float32)

    inv_b = 1.0 / B   # true batch size for the BatchNorm statistics

    def kernel(x_ref, wb_ref, bb_ref, w1_ref, b1_ref, bng_ref, bnb_ref,
               v_ref, hg_ref, b2_ref, f1_ref, f2_ref, y_ref, acc_ref):
        k = pl.program_id(0)

        @pl.when(k == 0)
        def _init():
            acc_ref[...] = jnp.zeros_like(acc_ref)

        # Backbone partial: GAP (sum; 1/HW already folded into wb) + Linear, accumulated over C tiles.
        pooled = jnp.sum(x_ref[...].astype(jnp.float32), axis=-1)            # [Bp, tc]
        acc_ref[...] += jnp.dot(pooled.astype(jnp.bfloat16), wb_ref[...],
                                preferred_element_type=jnp.float32)          # [Bp, Fp]

        @pl.when(k == pl.num_programs(0) - 1)
        def _finalize():
            # backbone tail: bias + ReLU -> f1
            f1 = jnp.maximum(acc_ref[...] + bb_ref[...], 0.0)                # [Bp, Fp] f32
            f1_ref[...] = f1

            # bottleneck: Linear -> BatchNorm1d (training mode, true-batch stats, no ReLU)
            z = jnp.dot(f1.astype(jnp.bfloat16), w1_ref[...],
                        preferred_element_type=jnp.float32) + b1_ref[...]    # [Bp, Dp]
            row = jax.lax.broadcasted_iota(jnp.int32, (Bp, Dp), 0)
            mask = (row < B).astype(jnp.float32)          # drop padded batch rows from stats
            mean = jnp.sum(z * mask, axis=0, keepdims=True) * inv_b
            diff = (z - mean) * mask
            var = jnp.sum(diff * diff, axis=0, keepdims=True) * inv_b        # biased (1/N), like torch
            f2 = (z - mean) * jax.lax.rsqrt(var + BN_EPS) * bng_ref[...] + bnb_ref[...]
            f2_ref[...] = f2

            # head: weight-normalized Linear (w = g * v / ||v||_col); tiny, kept in f32
            vv = v_ref[...]
            inv_norm = jax.lax.rsqrt(jnp.sum(vv * vv, axis=0, keepdims=True) + 1e-20)
            w2 = vv * (hg_ref[...] * inv_norm)                               # [Dp, Kp]
            y_ref[...] = jnp.dot(f2, w2, preferred_element_type=jnp.float32) + b2_ref[...]

    full = lambda k: (0, 0)
    grid_spec = pltpu.PrefetchScalarGridSpec(
        num_scalar_prefetch=0,
        grid=(n_ct,),
        in_specs=[
            pl.BlockSpec((Bp, tc, HW), lambda k: (0, k, 0)),   # x channel tile (pipelined)
            pl.BlockSpec((tc, Fp), lambda k: (k, 0)),          # wb channel tile (pipelined)
            pl.BlockSpec((1, Fp), full),
            pl.BlockSpec((Fp, Dp), full),
            pl.BlockSpec((1, Dp), full),
            pl.BlockSpec((1, Dp), full),
            pl.BlockSpec((1, Dp), full),
            pl.BlockSpec((Dp, Kp), full),
            pl.BlockSpec((1, Kp), full),
            pl.BlockSpec((1, Kp), full),
        ],
        out_specs=(
            pl.BlockSpec((Bp, Fp), full),
            pl.BlockSpec((Bp, Dp), full),
            pl.BlockSpec((Bp, Kp), full),
        ),
        scratch_shapes=[pltpu.VMEM((Bp, Fp), jnp.float32)],
    )

    flops = 2 * Bp * (Cp * HW + Cp * Fp + Fp * Dp + Dp * Kp)
    bytes_accessed = (x.size * 2 + wb_k.size * 2 + w1_k.size * 2
                      + 4 * (v_k.size + hg_k.size + b2_k.size + bb_k.size
                             + b1_k.size + bn_g_k.size + bn_b_k.size)
                      + 4 * (Bp * Fp + Bp * Dp + Bp * Kp))

    f1p, f2p, yp = pl.pallas_call(
        kernel,
        out_shape=(jax.ShapeDtypeStruct((Bp, Fp), jnp.float32),
                   jax.ShapeDtypeStruct((Bp, Dp), jnp.float32),
                   jax.ShapeDtypeStruct((Bp, Kp), jnp.float32)),
        grid_spec=grid_spec,
        compiler_params=pltpu.CompilerParams(
            dimension_semantics=("arbitrary",),          # C axis is a reduction (accumulator)
            vmem_limit_bytes=32 * 1024 * 1024),
        cost_estimate=pl.CostEstimate(flops=flops,
                                      transcendentals=2 * (Dp + Kp),
                                      bytes_accessed=bytes_accessed),
    )(x, wb_k, bb_k, w1_k, b1_k, bn_g_k, bn_b_k, v_k, hg_k, b2_k)

    return f1p[:B, :F], f2p[:B, :D], yp[:B, :K]


def make_params(key, in_channels, backbone_out, bottleneck_dim, num_classes):
    ks = jax.random.split(key, 3)

    def lin(k, fan_in, fan_out):
        bound = 1.0 / jnp.sqrt(fan_in)
        kw, kb = jax.random.split(k)
        w = jax.random.uniform(kw, (fan_in, fan_out), jnp.float32, -bound, bound)
        b = jax.random.uniform(kb, (1, fan_out), jnp.float32, -bound, bound)
        return w, b

    wb, bb = lin(ks[0], in_channels, backbone_out)        # synthetic backbone Linear
    w1, b1 = lin(ks[1], backbone_out, bottleneck_dim)     # bottleneck Linear
    bn_g = jnp.ones((1, bottleneck_dim), jnp.float32)     # BatchNorm1d gamma (init 1)
    bn_b = jnp.zeros((1, bottleneck_dim), jnp.float32)    # BatchNorm1d beta  (init 0)
    v, b2 = lin(ks[2], bottleneck_dim, num_classes)       # head Linear direction v (stored [in,out])
    hg = jnp.sqrt(jnp.sum(v * v, axis=0, keepdims=True))  # weight_norm g init = ||v|| (w == v at init)
    return (wb, bb, w1, b1, bn_g, bn_b, v, hg, b2)


def reference_forward(x_nchw, params):
    # Pure-JAX reference mirroring the PyTorch forward (training-mode BN, weight-norm head)
    # at the same mixed precision as the kernel (bf16 matmul inputs, f32 accumulation).
    wb, bb, w1, b1, bn_g, bn_b, v, hg, b2 = params
    B, C, H, W = x_nchw.shape
    HW = H * W
    xb = x_nchw.reshape(B, C, HW).astype(jnp.bfloat16)
    pooled = jnp.sum(xb.astype(jnp.float32), axis=-1)
    wbs = (wb * (1.0 / HW)).astype(jnp.bfloat16)
    f1 = jnp.maximum(jnp.dot(pooled.astype(jnp.bfloat16), wbs,
                             preferred_element_type=jnp.float32) + bb, 0.0)
    z = jnp.dot(f1.astype(jnp.bfloat16), w1.astype(jnp.bfloat16),
                preferred_element_type=jnp.float32) + b1
    mean = jnp.mean(z, axis=0, keepdims=True)
    var = jnp.mean((z - mean) ** 2, axis=0, keepdims=True)
    f2 = (z - mean) * jax.lax.rsqrt(var + BN_EPS) * bn_g + bn_b
    w2 = v * (hg / jnp.sqrt(jnp.sum(v * v, axis=0, keepdims=True)))
    y = jnp.dot(f2, w2, preferred_element_type=jnp.float32) + b2
    return f1, f2, y


if __name__ == "__main__":
    B, C, H, W = 2, 4, 16, 16        # image input, NCHW
    BACKBONE_OUT = 64                # backbone.out_features
    BOTTLENECK_DIM = 256             # bottleneck_dim (module default)
    NUM_CLASSES = 10

    key = jax.random.PRNGKey(0)
    kx, kp = jax.random.split(key)
    x = jax.random.normal(kx, (B, C, H, W), jnp.float32)
    params = make_params(kp, C, BACKBONE_OUT, BOTTLENECK_DIM, NUM_CLASSES)

    f1, f2, y = image_classifier_forward(x, params)
    jax.block_until_ready((f1, f2, y))

    f1_r, f2_r, y_r = reference_forward(x, params)
    assert f1.shape == (B, BACKBONE_OUT)
    assert f2.shape == (B, BOTTLENECK_DIM)
    assert y.shape == (B, NUM_CLASSES)
    assert jnp.allclose(f1, f1_r, atol=1e-2, rtol=1e-2)
    assert jnp.allclose(f2, f2_r, atol=1e-2, rtol=1e-2)
    assert jnp.allclose(y, y_r, atol=1e-2, rtol=1e-2)

    print("KERNEL_OK")
</pallas_src>

<mosaic_0001>
module attributes {stable_mosaic.version = 11 : i64} {
  func.func @kernel(%arg0: i32, %arg1: memref<8x8x256xbf16, #tpu.memory_space<vmem>>, %arg2: memref<8x128xbf16, #tpu.memory_space<vmem>>, %arg3: memref<1x128xf32, #tpu.memory_space<vmem>>, %arg4: memref<128x256xbf16, #tpu.memory_space<vmem>>, %arg5: memref<1x256xf32, #tpu.memory_space<vmem>>, %arg6: memref<1x256xf32, #tpu.memory_space<vmem>>, %arg7: memref<1x256xf32, #tpu.memory_space<vmem>>, %arg8: memref<256x128xf32, #tpu.memory_space<vmem>>, %arg9: memref<1x128xf32, #tpu.memory_space<vmem>>, %arg10: memref<1x128xf32, #tpu.memory_space<vmem>>, %arg11: memref<8x128xf32, #tpu.memory_space<vmem>>, %arg12: memref<8x256xf32, #tpu.memory_space<vmem>>, %arg13: memref<8x128xf32, #tpu.memory_space<vmem>>, %arg14: memref<8x128xf32, #tpu.memory_space<vmem>>) attributes {dimension_semantics = [#tpu.dimension_semantics<arbitrary>], iteration_bounds = array<i64: 1>, scalar_prefetch = 0 : i64, scratch_operands = 1 : i64, tpu.core_type = #tpu.core_type<tc>, window_params = [{transform_indices = @transform_0, window_bounds = array<i64: 8, 8, 256>}, {transform_indices = @transform_1, window_bounds = array<i64: 8, 128>}, {pipeline_mode = #tpu.pipeline_mode<synchronous>, transform_indices = @transform_2, window_bounds = array<i64: 1, 128>}, {pipeline_mode = #tpu.pipeline_mode<synchronous>, transform_indices = @transform_3, window_bounds = array<i64: 128, 256>}, {pipeline_mode = #tpu.pipeline_mode<synchronous>, transform_indices = @transform_4, window_bounds = array<i64: 1, 256>}, {pipeline_mode = #tpu.pipeline_mode<synchronous>, transform_indices = @transform_5, window_bounds = array<i64: 1, 256>}, {pipeline_mode = #tpu.pipeline_mode<synchronous>, transform_indices = @transform_6, window_bounds = array<i64: 1, 256>}, {pipeline_mode = #tpu.pipeline_mode<synchronous>, transform_indices = @transform_7, window_bounds = array<i64: 256, 128>}, {pipeline_mode = #tpu.pipeline_mode<synchronous>, transform_indices = @transform_8, window_bounds = array<i64: 1, 128>}, {pipeline_mode = #tpu.pipeline_mode<synchronous>, transform_indices = @transform_9, window_bounds = array<i64: 1, 128>}, {pipeline_mode = #tpu.pipeline_mode<synchronous>, transform_indices = @transform_10, window_bounds = array<i64: 8, 128>}, {pipeline_mode = #tpu.pipeline_mode<synchronous>, transform_indices = @transform_11, window_bounds = array<i64: 8, 256>}, {pipeline_mode = #tpu.pipeline_mode<synchronous>, transform_indices = @transform_12, window_bounds = array<i64: 8, 128>}]} {
    %c0_i32 = arith.constant 0 : i32
    %0 = arith.cmpi eq, %arg0, %c0_i32 : i32
    %1 = arith.extui %0 : i1 to i32
    %c0_i32_0 = arith.constant 0 : i32
    %2 = arith.cmpi ne, %1, %c0_i32_0 : i32
    scf.if %2 {
      %cst_12 = arith.constant 0.000000e+00 : f32
      %15 = vector.broadcast %cst_12 : f32 to vector<8x128xf32>
      %c0_13 = arith.constant 0 : index
      %c0_14 = arith.constant 0 : index
      %16 = vector.load %arg14[%c0_13, %c0_14] : memref<8x128xf32, #tpu.memory_space<vmem>>, vector<8x128xf32>
      tpu.vector_store %arg14[%c0_13, %c0_14], %15 {strides = array<i32>} : memref<8x128xf32, #tpu.memory_space<vmem>>, vector<8x128xf32>,
    } else {
    }
    %c0 = arith.constant 0 : index
    %c0_1 = arith.constant 0 : index
    %c0_2 = arith.constant 0 : index
    %3 = vector.load %arg1[%c0, %c0_1, %c0_2] : memref<8x8x256xbf16, #tpu.memory_space<vmem>>, vector<8x8x256xbf16>
    %4 = arith.extf %3 : vector<8x8x256xbf16> to vector<8x8x256xf32>
    %cst = arith.constant dense<0.000000e+00> : vector<8x8xf32>
    %5 = vector.multi_reduction <add>, %4, %cst [2] : vector<8x8x256xf32> to vector<8x8xf32>
    %c0_3 = arith.constant 0 : index
    %c0_4 = arith.constant 0 : index
    %6 = vector.load %arg14[%c0_3, %c0_4] : memref<8x128xf32, #tpu.memory_space<vmem>>, vector<8x128xf32>
    %7 = arith.truncf %5 : vector<8x8xf32> to vector<8x8xbf16>
    %c0_5 = arith.constant 0 : index
    %c0_6 = arith.constant 0 : index
    %8 = vector.load %arg2[%c0_5, %c0_6] : memref<8x128xbf16, #tpu.memory_space<vmem>>, vector<8x128xbf16>
    %cst_7 = arith.constant dense<0.000000e+00> : vector<8x128xf32>
    %9 = tpu.matmul %7, %8, %cst_7 {dimension_numbers = #tpu.dot_dimension_numbers<[1], [0], [0], [1], [0, 0, 1, 1], [], []>} : vector<8x8xbf16>, vector<8x128xbf16>, vector<8x128xf32> -> vector<8x128xf32>
    %10 = arith.addf %6, %9 : vector<8x128xf32>
    %c0_8 = arith.constant 0 : index
    %c0_9 = arith.constant 0 : index
    %11 = vector.load %arg14[%c0_8, %c0_9] : memref<8x128xf32, #tpu.memory_space<vmem>>, vector<8x128xf32>
    tpu.vector_store %arg14[%c0_8, %c0_9], %10 {strides = array<i32>} : memref<8x128xf32, #tpu.memory_space<vmem>>, vector<8x128xf32>,
    %c0_i32_10 = arith.constant 0 : i32
    %12 = arith.cmpi eq, %arg0, %c0_i32_10 : i32
    %13 = arith.extui %12 : i1 to i32
    %c0_i32_11 = arith.constant 0 : i32
    %14 = arith.cmpi ne, %13, %c0_i32_11 : i32
    scf.if %14 {
      %c0_12 = arith.constant 0 : index
      %c0_13 = arith.constant 0 : index
      %15 = vector.load %arg14[%c0_12, %c0_13] : memref<8x128xf32, #tpu.memory_space<vmem>>, vector<8x128xf32>
      %c0_14 = arith.constant 0 : index
      %c0_15 = arith.constant 0 : index
      %16 = vector.load %arg3[%c0_14, %c0_15] : memref<1x128xf32, #tpu.memory_space<vmem>>, vector<1x128xf32>
      %17 = vector.broadcast %16 : vector<1x128xf32> to vector<8x128xf32>
      %18 = arith.addf %15, %17 : vector<8x128xf32>
      %cst_16 = arith.constant 0.000000e+00 : f32
      %19 = vector.broadcast %cst_16 : f32 to vector<8x128xf32>
      %20 = arith.maximumf %18, %19 : vector<8x128xf32>
      %c0_17 = arith.constant 0 : index
      %c0_18 = arith.constant 0 : index
      %21 = vector.load %arg11[%c0_17, %c0_18] : memref<8x128xf32, #tpu.memory_space<vmem>>, vector<8x128xf32>
      tpu.vector_store %arg11[%c0_17, %c0_18], %20 {strides = array<i32>} : memref<8x128xf32, #tpu.memory_space<vmem>>, vector<8x128xf32>,
      %22 = arith.truncf %20 : vector<8x128xf32> to vector<8x128xbf16>
      %c0_19 = arith.constant 0 : index
      %c0_20 = arith.constant 0 : index
      %23 = vector.load %arg4[%c0_19, %c0_20] : memref<128x256xbf16, #tpu.memory_space<vmem>>, vector<128x256xbf16>
      %cst_21 = arith.constant dense<0.000000e+00> : vector<8x256xf32>
      %24 = tpu.matmul %22, %23, %cst_21 {dimension_numbers = #tpu.dot_dimension_numbers<[1], [0], [0], [1], [0, 0, 1, 1], [], []>} : vector<8x128xbf16>, vector<128x256xbf16>, vector<8x256xf32> -> vector<8x256xf32>
      %c0_22 = arith.constant 0 : index
      %c0_23 = arith.constant 0 : index
      %25 = vector.load %arg5[%c0_22, %c0_23] : memref<1x256xf32, #tpu.memory_space<vmem>>, vector<1x256xf32>
      %26 = vector.broadcast %25 : vector<1x256xf32> to vector<8x256xf32>
      %27 = arith.addf %24, %26 : vector<8x256xf32>
      %28 = tpu.iota {dimensions = array<i32: 0>} : vector<8x256xi32>
      %c2_i32 = arith.constant 2 : i32
      %29 = vector.broadcast %c2_i32 : i32 to vector<8x256xi32>
      %30 = arith.cmpi slt, %28, %29 : vector<8x256xi32>
      %31 = arith.extui %30 : vector<8x256xi1> to vector<8x256xi32>
      %32 = arith.sitofp %31 : vector<8x256xi32> to vector<8x256xf32>
      %33 = arith.mulf %27, %32 : vector<8x256xf32>
      %cst_24 = arith.constant dense<0.000000e+00> : vector<256xf32>
      %34 = vector.multi_reduction <add>, %33, %cst_24 [0] : vector<8x256xf32> to vector<256xf32>
      %35 = vector.shape_cast %34 : vector<256xf32> to vector<1x256xf32>
      %cst_25 = arith.constant 5.000000e-01 : f32
      %36 = vector.broadcast %cst_25 : f32 to vector<1x256xf32>
      %37 = arith.mulf %35, %36 : vector<1x256xf32>
      %38 = vector.broadcast %37 : vector<1x256xf32> to vector<8x256xf32>
      %39 = arith.subf %27, %38 : vector<8x256xf32>
      %40 = arith.mulf %39, %32 : vector<8x256xf32>
      %41 = arith.mulf %40, %40 : vector<8x256xf32>
      %cst_26 = arith.constant dense<0.000000e+00> : vector<256xf32>
      %42 = vector.multi_reduction <add>, %41, %cst_26 [0] : vector<8x256xf32> to vector<256xf32>
      %43 = vector.shape_cast %42 : vector<256xf32> to vector<1x256xf32>
      %cst_27 = arith.constant 5.000000e-01 : f32
      %44 = vector.broadcast %cst_27 : f32 to vector<1x256xf32>
      %45 = arith.mulf %43, %44 : vector<1x256xf32>
      %46 = vector.broadcast %37 : vector<1x256xf32> to vector<8x256xf32>
      %47 = arith.subf %27, %46 : vector<8x256xf32>
      %cst_28 = arith.constant 9.99999974E-6 : f32
      %48 = vector.broadcast %cst_28 : f32 to vector<1x256xf32>
      %49 = arith.addf %45, %48 : vector<1x256xf32>
      %50 = math.rsqrt %49 : vector<1x256xf32>
      %51 = vector.broadcast %50 : vector<1x256xf32> to vector<8x256xf32>
      %52 = arith.mulf %47, %51 : vector<8x256xf32>
      %c0_29 = arith.constant 0 : index
      %c0_30 = arith.constant 0 : index
      %53 = vector.load %arg6[%c0_29, %c0_30] : memref<1x256xf32, #tpu.memory_space<vmem>>, vector<1x256xf32>
      %54 = vector.broadcast %53 : vector<1x256xf32> to vector<8x256xf32>
      %55 = arith.mulf %52, %54 : vector<8x256xf32>
      %c0_31 = arith.constant 0 : index
      %c0_32 = arith.constant 0 : index
      %56 = vector.load %arg7[%c0_31, %c0_32] : memref<1x256xf32, #tpu.memory_space<vmem>>, vector<1x256xf32>
      %57 = vector.broadcast %56 : vector<1x256xf32> to vector<8x256xf32>
      %58 = arith.addf %55, %57 : vector<8x256xf32>
      %c0_33 = arith.constant 0 : index
      %c0_34 = arith.constant 0 : index
      %59 = vector.load %arg12[%c0_33, %c0_34] : memref<8x256xf32, #tpu.memory_space<vmem>>, vector<8x256xf32>
      tpu.vector_store %arg12[%c0_33, %c0_34], %58 {strides = array<i32>} : memref<8x256xf32, #tpu.memory_space<vmem>>, vector<8x256xf32>,
      %c0_35 = arith.constant 0 : index
      %c0_36 = arith.constant 0 : index
      %60 = vector.load %arg8[%c0_35, %c0_36] : memref<256x128xf32, #tpu.memory_space<vmem>>, vector<256x128xf32>
      %61 = arith.mulf %60, %60 : vector<256x128xf32>
      %cst_37 = arith.constant dense<0.000000e+00> : vector<128xf32>
      %62 = vector.multi_reduction <add>, %61, %cst_37 [0] : vector<256x128xf32> to vector<128xf32>
      %63 = vector.shape_cast %62 : vector<128xf32> to vector<1x128xf32>
      %cst_38 = arith.constant 9.99999968E-21 : f32
      %64 = vector.broadcast %cst_38 : f32 to vector<1x128xf32>
      %65 = arith.addf %63, %64 : vector<1x128xf32>
      %66 = math.rsqrt %65 : vector<1x128xf32>
      %c0_39 = arith.constant 0 : index
      %c0_40 = arith.constant 0 : index
      %67 = vector.load %arg9[%c0_39, %c0_40] : memref<1x128xf32, #tpu.memory_space<vmem>>, vector<1x128xf32>
      %68 = arith.mulf %67, %66 : vector<1x128xf32>
      %69 = vector.broadcast %68 : vector<1x128xf32> to vector<256x128xf32>
      %70 = arith.mulf %60, %69 : vector<256x128xf32>
      %cst_41 = arith.constant dense<0.000000e+00> : vector<8x128xf32>
      %71 = tpu.matmul %58, %70, %cst_41 {dimension_numbers = #tpu.dot_dimension_numbers<[1], [0], [0], [1], [0, 0, 1, 1], [], []>} : vector<8x256xf32>, vector<256x128xf32>, vector<8x128xf32> -> vector<8x128xf32>
      %c0_42 = arith.constant 0 : index
      %c0_43 = arith.constant 0 : index
      %72 = vector.load %arg10[%c0_42, %c0_43] : memref<1x128xf32, #tpu.memory_space<vmem>>, vector<1x128xf32>
      %73 = vector.broadcast %72 : vector<1x128xf32> to vector<8x128xf32>
      %74 = arith.addf %71, %73 : vector<8x128xf32>
      %c0_44 = arith.constant 0 : index
      %c0_45 = arith.constant 0 : index
      %75 = vector.load %arg13[%c0_44, %c0_45] : memref<8x128xf32, #tpu.memory_space<vmem>>, vector<8x128xf32>
      tpu.vector_store %arg13[%c0_44, %c0_45], %74 {strides = array<i32>} : memref<8x128xf32, #tpu.memory_space<vmem>>, vector<8x128xf32>,
    } else {
    }
    return
  }
  func.func @transform_0(%arg0: i32) -> (i32, i32, i32) {
    %c0_i32 = arith.constant 0 : i32
    %c0_i32_0 = arith.constant 0 : i32
    %c0_i32_1 = arith.constant 0 : i32
    return %c0_i32, %arg0, %c0_i32_0 : i32, i32, i32
  }
  func.func @transform_1(%arg0: i32) -> (i32, i32) {
    %c0_i32 = arith.constant 0 : i32
    %c0_i32_0 = arith.constant 0 : i32
    return %arg0, %c0_i32 : i32, i32
  }
  func.func @transform_2(%arg0: i32) -> (i32, i32) {
    %c0_i32 = arith.constant 0 : i32
    %c0_i32_0 = arith.constant 0 : i32
    %c0_i32_1 = arith.constant 0 : i32
    return %c0_i32, %c0_i32_0 : i32, i32
  }
  func.func @transform_3(%arg0: i32) -> (i32, i32) {
    %c0_i32 = arith.constant 0 : i32
    %c0_i32_0 = arith.constant 0 : i32
    %c0_i32_1 = arith.constant 0 : i32
    return %c0_i32, %c0_i32_0 : i32, i32
  }
  func.func @transform_4(%arg0: i32) -> (i32, i32) {
    %c0_i32 = arith.constant 0 : i32
    %c0_i32_0 = arith.constant 0 : i32
    %c0_i32_1 = arith.constant 0 : i32
    return %c0_i32, %c0_i32_0 : i32, i32
  }
  func.func @transform_5(%arg0: i32) -> (i32, i32) {
    %c0_i32 = arith.constant 0 : i32
    %c0_i32_0 = arith.constant 0 : i32
    %c0_i32_1 = arith.constant 0 : i32
    return %c0_i32, %c0_i32_0 : i32, i32
  }
  func.func @transform_6(%arg0: i32) -> (i32, i32) {
    %c0_i32 = arith.constant 0 : i32
    %c0_i32_0 = arith.constant 0 : i32
    %c0_i32_1 = arith.constant 0 : i32
    return %c0_i32, %c0_i32_0 : i32, i32
  }
  func.func @transform_7(%arg0: i32) -> (i32, i32) {
    %c0_i32 = arith.constant 0 : i32
    %c0_i32_0 = arith.constant 0 : i32
    %c0_i32_1 = arith.constant 0 : i32
    return %c0_i32, %c0_i32_0 : i32, i32
  }
  func.func @transform_8(%arg0: i32) -> (i32, i32) {
    %c0_i32 = arith.constant 0 : i32
    %c0_i32_0 = arith.constant 0 : i32
    %c0_i32_1 = arith.constant 0 : i32
    return %c0_i32, %c0_i32_0 : i32, i32
  }
  func.func @transform_9(%arg0: i32) -> (i32, i32) {
    %c0_i32 = arith.constant 0 : i32
    %c0_i32_0 = arith.constant 0 : i32
    %c0_i32_1 = arith.constant 0 : i32
    return %c0_i32, %c0_i32_0 : i32, i32
  }
  func.func @transform_10(%arg0: i32) -> (i32, i32) {
    %c0_i32 = arith.constant 0 : i32
    %c0_i32_0 = arith.constant 0 : i32
    %c0_i32_1 = arith.constant 0 : i32
    return %c0_i32, %c0_i32_0 : i32, i32
  }
  func.func @transform_11(%arg0: i32) -> (i32, i32) {
    %c0_i32 = arith.constant 0 : i32
    %c0_i32_0 = arith.constant 0 : i32
    %c0_i32_1 = arith.constant 0 : i32
    return %c0_i32, %c0_i32_0 : i32, i32
  }
  func.func @transform_12(%arg0: i32) -> (i32, i32) {
    %c0_i32 = arith.constant 0 : i32
    %c0_i32_0 = arith.constant 0 : i32
    %c0_i32_1 = arith.constant 0 : i32
    return %c0_i32, %c0_i32_0 : i32, i32
  }
}

</mosaic_0001>

<llo_original>
// kernel: tpu_custom_call.1
$region0: #{tpu_custom_call.1}
  #allocation0 [shape = 'u32[]', space=smem, size = 0x4, offset = 0x4, fixed_abs, tag = 'smem constant byte address 0x4 - core index']
  #allocation1 [shape = 'u32[72,128]{1,0:T(1,128)}', space=vmem, size = 0x9000, scoped, tag = 'internal scratch']
  #allocation2 [shape = 'f32[8,128]{1,0:T(8,128)}', space=vmem, size = 0x1000, scoped, tag = 'scratch operand']
  %s0 = inlined_call_operand.hbm [shape: bf16[8,8,256], index: 0, kind: input, shape index: {}]
  %s1 = inlined_call_operand.hbm [shape: bf16[8,128], index: 1, kind: input, shape index: {}]
  %s2 = inlined_call_operand.hbm [shape: f32[1,128], index: 2, kind: input, shape index: {}]
  %s3 = inlined_call_operand.hbm [shape: bf16[128,256], index: 3, kind: input, shape index: {}]
  %s4 = inlined_call_operand.vmem [shape: f32[1,256], index: 4, kind: input, shape index: {}]
  %s5 = inlined_call_operand.vmem [shape: f32[1,256], index: 5, kind: input, shape index: {}]
  %s6 = inlined_call_operand.hbm [shape: f32[1,256], index: 6, kind: input, shape index: {}]
  %s7 = inlined_call_operand.hbm [shape: f32[256,128], index: 7, kind: input, shape index: {}]
  %s8 = inlined_call_operand.vmem [shape: f32[1,128], index: 8, kind: input, shape index: {}]
  %s9 = inlined_call_operand.vmem [shape: f32[1,128], index: 9, kind: input, shape index: {}]
  %s10 = inlined_call_operand.hbm [shape: f32[8,128], index: 10, kind: output, shape index: {0}]
  %s11 = inlined_call_operand.hbm [shape: f32[8,256], index: 11, kind: output, shape index: {1}]
  %s12 = inlined_call_operand.hbm [shape: f32[8,128], index: 12, kind: output, shape index: {2}]
  %13 = xla_tuple %s10, %s11, %s12
  %s14 = sld [smem:[#allocation0]]
  $region98: #{tpu_custom_call.1} parent=0
    _
  %s16 = ssub.s32 1, %s14
  %s17 = scalar_select 0, %s16, %s14
  $region1: #{tpu_custom_call.1} parent=0
    #allocation3 [shape = 'u8[32768]{0}', space=vmem, size = 0x8000, scoped, tag = 'input window, operand 0, single buffered']
    #allocation4 [shape = 's32[1]{0}', space=sflag, size = 0x4, scoped, tag = 'scoped memory for tpu_custom_call.1']
    #allocation5 [shape = 's32[1]{0}', space=sflag, size = 0x4, scoped, tag = 'scoped memory for tpu_custom_call.1']
    #allocation6 [shape = 'u8[2048]{0}', space=vmem, size = 0x800, scoped, tag = 'input window, operand 1, single buffered']
    #allocation7 [shape = 's32[1]{0}', space=sflag, size = 0x4, scoped, tag = 'scoped memory for tpu_custom_call.1']
    #allocation8 [shape = 'u8[512]{0}', space=vmem, size = 0x400, scoped, tag = 'input window, operand 2, single buffered']
    #allocation9 [shape = 'u8[65536]{0}', space=vmem, size = 0x10000, scoped, tag = 'input window, operand 3, single buffered']
    #allocation10 [shape = 's32[1]{0}', space=sflag, size = 0x4, scoped, tag = 'scoped memory for tpu_custom_call.1']
    #allocation11 [shape = 'u8[1024]{0}', space=vmem, size = 0x400, scoped, tag = 'input window, operand 6, single buffered']
    #allocation12 [shape = 'u8[131072]{0}', space=vmem, size = 0x20000, scoped, tag = 'input window, operand 7, single buffered']
    #allocation13 [shape = 's32[1]{0}', space=sflag, size = 0x4, scoped, tag = 'scoped memory for tpu_custom_call.1']
    #allocation14 [shape = 'u8[4096]{0}', space=vmem, size = 0x1000, scoped, tag = 'output window, operand 0, single buffered']
    #allocation15 [shape = 'u8[8192]{0}', space=vmem, size = 0x2000, scoped, tag = 'output window, operand 1, single buffered']
    #allocation16 [shape = 's32[1]{0}', space=sflag, size = 0x4, scoped, tag = 'scoped memory for tpu_custom_call.1']
    #allocation17 [shape = 'u8[4096]{0}', space=vmem, size = 0x1000, scoped, tag = 'output window, operand 2, single buffered']
    %18 = vsyncpa [#allocation4], 0
    %19 = vsyncpa [#allocation7], 0
    %20 = vsyncpa [#allocation10], 0
    %21 = vsyncpa [#allocation13], 0
    %22 = vsyncpa [#allocation5], 0
    %23 = vsyncpa [#allocation16], 0
    // Predicated region
    $region2: #{tpu_custom_call.1} parent=1 // pred_check
      _
    $region3: #{tpu_custom_call.1} parent=1 // pred_check_branch
      %25 = sbr.rel (0) target = $region5
    $region4: #{tpu_custom_call.1} parent=1 // pred_region
      %27 = vsyncadd [#allocation4], 0
      %s28 = sshll.u32 %s0, 4
      %s29 = int_to_ptr.hbm [resolvable:$true] %s28
      %s30 = sshll.u32 [#allocation3], 4
      %s31 = int_to_ptr.vmem [resolvable:$true] %s30
      %36 = dma.hbm_to_vmem [thread:$0]  %s29, 1024, %s31, [#allocation4], 128, 128, 8
    $region5: #{tpu_custom_call.1} parent=1 // pred_fallthru
      _
    // Predicated region
    $region6: #{tpu_custom_call.1} parent=1 // pred_check
      _
    $region7: #{tpu_custom_call.1} parent=1 // pred_check_branch
      %38 = sbr.rel (0) target = $region9
    $region8: #{tpu_custom_call.1} parent=1 // pred_region
      %40 = vsyncadd [#allocation7], 0
      %s42 = sshll.u32 %s1, 4
      %s43 = int_to_ptr.hbm [resolvable:$true] %s42
      %s44 = sshll.u32 [#allocation6], 4
      %s45 = int_to_ptr.vmem [resolvable:$true] %s44
      %47 = dma.hbm_to_vmem [thread:$0]  %s43, 64, %s45, [#allocation7]
    $region9: #{tpu_custom_call.1} parent=1 // pred_fallthru
      _
    // Predicated region
    $region10: #{tpu_custom_call.1} parent=1 // pred_check
      _
    $region11: #{tpu_custom_call.1} parent=1 // pred_check_branch
      %49 = sbr.rel (0) target = $region13
    $region12: #{tpu_custom_call.1} parent=1 // pred_region
      %51 = vsyncadd [#allocation7], 0
      %s53 = sshll.u32 %s2, 4
      %s54 = int_to_ptr.hbm [resolvable:$true] %s53
      %s55 = sshll.u32 [#allocation8], 4
      %s56 = int_to_ptr.vmem [resolvable:$true] %s55
      %58 = dma.hbm_to_vmem [thread:$0]  %s54, 16, %s56, [#allocation7]
    $region13: #{tpu_custom_call.1} parent=1 // pred_fallthru
      _
    // Predicated region
    $region14: #{tpu_custom_call.1} parent=1 // pred_check
      _
    $region15: #{tpu_custom_call.1} parent=1 // pred_check_branch
      %60 = sbr.rel (0) target = $region17
    $region16: #{tpu_custom_call.1} parent=1 // pred_region
      %62 = vsyncadd [#allocation10], 0
      %s63 = sshll.u32 %s3, 4
      %s64 = int_to_ptr.hbm [resolvable:$true] %s63
      %s65 = sshll.u32 [#allocation9], 4
      %s66 = int_to_ptr.vmem [resolvable:$true] %s65
      %71 = dma.hbm_to_vmem [thread:$0]  %s64, 2048, %s66, [#allocation10], 128, 128, 8
    $region17: #{tpu_custom_call.1} parent=1 // pred_fallthru
      _
    // Predicated region
    $region18: #{tpu_custom_call.1} parent=1 // pred_check
      _
    $region19: #{tpu_custom_call.1} parent=1 // pred_check_branch
      %73 = sbr.rel (0) target = $region21
    $region20: #{tpu_custom_call.1} parent=1 // pred_region
      _
    $region21: #{tpu_custom_call.1} parent=1 // pred_fallthru
      _
    // Predicated region
    $region22: #{tpu_custom_call.1} parent=1 // pred_check
      _
    $region23: #{tpu_custom_call.1} parent=1 // pred_check_branch
      %75 = sbr.rel (0) target = $region25
    $region24: #{tpu_custom_call.1} parent=1 // pred_region
      _
    $region25: #{tpu_custom_call.1} parent=1 // pred_fallthru
      _
    // Predicated region
    $region26: #{tpu_custom_call.1} parent=1 // pred_check
      _
    $region27: #{tpu_custom_call.1} parent=1 // pred_check_branch
      %77 = sbr.rel (0) target = $region29
    $region28: #{tpu_custom_call.1} parent=1 // pred_region
      %79 = vsyncadd [#allocation10], 0
      %s81 = sshll.u32 %s6, 4
      %s82 = int_to_ptr.hbm [resolvable:$true] %s81
      %s83 = sshll.u32 [#allocation11], 4
      %s84 = int_to_ptr.vmem [resolvable:$true] %s83
      %86 = dma.hbm_to_vmem [thread:$0]  %s82, 32, %s84, [#allocation10]
    $region29: #{tpu_custom_call.1} parent=1 // pred_fallthru
      _
    // Predicated region
    $region30: #{tpu_custom_call.1} parent=1 // pred_check
      _
    $region31: #{tpu_custom_call.1} parent=1 // pred_check_branch
      %88 = sbr.rel (0) target = $region33
    $region32: #{tpu_custom_call.1} parent=1 // pred_region
      %90 = vsyncadd [#allocation13], 0
      %s91 = sshll.u32 %s7, 4
      %s92 = int_to_ptr.hbm [resolvable:$true] %s91
      %s93 = sshll.u32 [#allocation12], 4
      %s94 = int_to_ptr.vmem [resolvable:$true] %s93
      %99 = dma.hbm_to_vmem [thread:$0]  %s92, 4096, %s94, [#allocation13], 128, 128, 8
    $region33: #{tpu_custom_call.1} parent=1 // pred_fallthru
      _
    // Predicated region
    $region34: #{tpu_custom_call.1} parent=1 // pred_check
      _
    $region35: #{tpu_custom_call.1} parent=1 // pred_check_branch
      %101 = sbr.rel (0) target = $region37
    $region36: #{tpu_custom_call.1} parent=1 // pred_region
      _
    $region37: #{tpu_custom_call.1} parent=1 // pred_fallthru
      _
    // Predicated region
    $region38: #{tpu_custom_call.1} parent=1 // pred_check
      _
    $region39: #{tpu_custom_call.1} parent=1 // pred_check_branch
      %103 = sbr.rel (0) target = $region41
    $region40: #{tpu_custom_call.1} parent=1 // pred_region
      _
    $region41: #{tpu_custom_call.1} parent=1 // pred_fallthru
      _
    // Predicated region
    $region42: #{tpu_custom_call.1} parent=1 // pred_check
      _
    $region43: #{tpu_custom_call.1} parent=1 // pred_check_branch
      %105 = sbr.rel (0) target = $region45
    $region44: #{tpu_custom_call.1} parent=1 // pred_region
      %107 = dma.done [#allocation4], 1024
    $region45: #{tpu_custom_call.1} parent=1 // pred_fallthru
      _
    // Predicated region
    $region46: #{tpu_custom_call.1} parent=1 // pred_check
      _
    $region47: #{tpu_custom_call.1} parent=1 // pred_check_branch
      %109 = sbr.rel (0) target = $region49
    $region48: #{tpu_custom_call.1} parent=1 // pred_region
      %111 = dma.done [#allocation7], 64
    $region49: #{tpu_custom_call.1} parent=1 // pred_fallthru
      _
    // Predicated region
    $region50: #{tpu_custom_call.1} parent=1 // pred_check
      _
    $region51: #{tpu_custom_call.1} parent=1 // pred_check_branch
      %113 = sbr.rel (0) target = $region53
    $region52: #{tpu_custom_call.1} parent=1 // pred_region
      %115 = dma.done [#allocation7], 16
    $region53: #{tpu_custom_call.1} parent=1 // pred_fallthru
      _
    // Predicated region
    $region54: #{tpu_custom_call.1} parent=1 // pred_check
      _
    $region55: #{tpu_custom_call.1} parent=1 // pred_check_branch
      %117 = sbr.rel (0) target = $region57
    $region56: #{tpu_custom_call.1} parent=1 // pred_region
      %119 = dma.done [#allocation10], 2048
    $region57: #{tpu_custom_call.1} parent=1 // pred_fallthru
      _
    // Predicated region
    $region58: #{tpu_custom_call.1} parent=1 // pred_check
      _
    $region59: #{tpu_custom_call.1} parent=1 // pred_check_branch
      %121 = sbr.rel (0) target = $region61
    $region60: #{tpu_custom_call.1} parent=1 // pred_region
      %123 = dma.done [#allocation10], 32
    $region61: #{tpu_custom_call.1} parent=1 // pred_fallthru
      _
    // Predicated region
    $region62: #{tpu_custom_call.1} parent=1 // pred_check
      _
    $region63: #{tpu_custom_call.1} parent=1 // pred_check_branch
      %125 = sbr.rel (0) target = $region65
    $region64: #{tpu_custom_call.1} parent=1 // pred_region
      %127 = dma.done [#allocation13], 4096
    $region65: #{tpu_custom_call.1} parent=1 // pred_fallthru
      _
    %p129 = scmp.eq.s32.totalorder 0, 0
    // Predicated region
    $region66: #{tpu_custom_call.1} parent=1 // pred_check
      %p130 = pneg %p129
    $region67: #{tpu_custom_call.1} parent=1 // pred_check_branch
      %132 = sbr.rel (%p130) target = $region69
    $region68: #{tpu_custom_call.1} parent=1 // pred_region
      %133 = vst [vmem:[#allocation2] sm:$0xff] 0.0
    $region69: #{tpu_custom_call.1} parent=1 // pred_fallthru
      _
    %v134 = vld [vmem:[#allocation3] sm:$0xff]
    %v135 = vld [vmem:[#allocation3 + $0x8] sm:$0xff]
    %v136 = vld [vmem:[#allocation3 + $0x10] sm:$0xff]
    %v137 = vld [vmem:[#allocation3 + $0x18] sm:$0xff]
    %v138 = vld [vmem:[#allocation3 + $0x20] sm:$0xff]
    %v139 = vld [vmem:[#allocation3 + $0x28] sm:$0xff]
    %v140 = vld [vmem:[#allocation3 + $0x30] sm:$0xff]
    %v141 = vld [vmem:[#allocation3 + $0x38] sm:$0xff]
    %v142 = vunpack.c.l.bf16 %v134
    %v143 = vunpack.c.h.bf16 %v134
    %v144 = vunpack.c.l.bf16 %v135
    %v145 = vunpack.c.h.bf16 %v135
    %v146 = vunpack.c.l.bf16 %v136
    %v147 = vunpack.c.h.bf16 %v136
    %v148 = vunpack.c.l.bf16 %v137
    %v149 = vunpack.c.h.bf16 %v137
    %v150 = vunpack.c.l.bf16 %v138
    %v151 = vunpack.c.h.bf16 %v138
    %v152 = vunpack.c.l.bf16 %v139
    %v153 = vunpack.c.h.bf16 %v139
    %v154 = vunpack.c.l.bf16 %v140
    %v155 = vunpack.c.h.bf16 %v140
    %v156 = vunpack.c.l.bf16 %v141
    %v157 = vunpack.c.h.bf16 %v141
    %v158 = vadd.f32 %v142, %v143
    %159 = vadd.xlane.f32.xlu0 %v158
    %v160 = vpop.xlane.xlu0 %159
    %v161 = vadd.f32 %v144, %v145
    %162 = vadd.xlane.f32.xlu0 %v161
    %v163 = vpop.xlane.xlu0 %162
    %v164 = vadd.f32 %v146, %v147
    %165 = vadd.xlane.f32.xlu0 %v164
    %v166 = vpop.xlane.xlu0 %165
    %v167 = vadd.f32 %v148, %v149
    %168 = vadd.xlane.f32.xlu0 %v167
    %v169 = vpop.xlane.xlu0 %168
    %v170 = vadd.f32 %v150, %v151
    %171 = vadd.xlane.f32.xlu0 %v170
    %v172 = vpop.xlane.xlu0 %171
    %v173 = vadd.f32 %v152, %v153
    %174 = vadd.xlane.f32.xlu0 %v173
    %v175 = vpop.xlane.xlu0 %174
    %v176 = vadd.f32 %v154, %v155
    %177 = vadd.xlane.f32.xlu0 %v176
    %v178 = vpop.xlane.xlu0 %177
    %v179 = vadd.f32 %v156, %v157
    %180 = vadd.xlane.f32.xlu0 %v179
    %v181 = vpop.xlane.xlu0 %180
    %v182 = vld [vmem:[#allocation2] sm:$0xff]
    %v183 = vpack.c.bf16 %v160, %v160
    %v184 = vpack.c.bf16 %v163, %v163
    %v185 = vpack.c.bf16 %v166, %v166
    %v186 = vpack.c.bf16 %v169, %v169
    %v187 = vpack.c.bf16 %v172, %v172
    %v188 = vpack.c.bf16 %v175, %v175
    %v189 = vpack.c.bf16 %v178, %v178
    %v190 = vpack.c.bf16 %v181, %v181
    %v191 = vld [vmem:[#allocation6] sm:$0xf]
    %v200 = vunpack.c.l.b16 %v183
    %v201 = vunpack.c.l.b16 %v184
    %v202 = vunpack.c.l.b16 %v185
    %v203 = vunpack.c.l.b16 %v186
    %v204 = vunpack.c.l.b16 %v187
    %v205 = vunpack.c.l.b16 %v188
    %v206 = vunpack.c.l.b16 %v189
    %v207 = vunpack.c.l.b16 %v190
    %v208 = vlaneseq
    %v209 = vand.u32 %v208, 127
    %v210 = vperm.slane %v200, %v209
    %v211 = vperm.slane %v201, %v209
    %v212 = vperm.slane %v202, %v209
    %v213 = vperm.slane %v203, %v209
    %v214 = vperm.slane %v204, %v209
    %v215 = vperm.slane %v205, %v209
    %v216 = vperm.slane %v206, %v209
    %v217 = vperm.slane %v207, %v209
    %vm218 = vcmask 1041409
    %v219 = vsel %vm218, %v211, %v210
    %vm220 = vcmask 1042434
    %v221 = vsel %vm220, %v212, %v219
    %vm222 = vcmask 1043459
    %v223 = vsel %vm222, %v213, %v221
    %vm224 = vcmask 1044484
    %v225 = vsel %vm224, %v214, %v223
    %vm226 = vcmask 1045509
    %v227 = vsel %vm226, %v215, %v225
    %vm228 = vcmask 1046534
    %v229 = vsel %vm228, %v216, %v227
    %vm230 = vcmask 1047559
    %v231 = vsel %vm230, %v217, %v229
    %v232 = vpack.c.b16 %v231, %v231
    %vm233 = vcmask 64512
    %v235 = vsel %vm233, %v232, 0
    %vm237 = vcmask 1043456
    %v239 = vsel %vm237, %v191, 0
    %241 = vmatpush.bf16.msra.mxu0 0
    %242 = vmatpush.bf16.msra.mxu0 0
    %243 = vmatpush.bf16.msra.mxu0 0
    %244 = vmatpush.bf16.msra.mxu0 0
    %245 = vmatpush.bf16.msra.mxu0 0
    %246 = vmatpush.bf16.msra.mxu0 0
    %247 = vmatpush.bf16.msra.mxu0 0
    %248 = vmatpush.bf16.msra.mxu0 %v239
    %249 = vmatmul.bf16.gmra.mxu0 %v235
    %v250 = vpop.f32.mrf.mxu0
    %v251 = vadd.f32 0.0, %v250
    %v252 = vpop.f32.mrf.mxu0
    %253 = vdwg.mxu0
    %v254 = vadd.f32 %v182, %v251
    %255 = vst [vmem:[#allocation2] sm:$0xff] %v254
    // Predicated region
    $region70: #{tpu_custom_call.1} parent=1 // pred_check
      %p256 = pneg %p129
    $region71: #{tpu_custom_call.1} parent=1 // pred_check_branch
      %258 = sbr.rel (%p256) target = $region73
    $region72: #{tpu_custom_call.1} parent=1 // pred_region
      %v259 = vld [vmem:[#allocation2] sm:$0xff]
      %v260 = vld [vmem:[#allocation8] sm:$0x1]
      %v262 = vperm.slane %v260, 0
      %v264 = vadd.f32 %v259, %v262
      %v265 = vmax.f32 %v264, 0.0
      %266 = vst [vmem:[#allocation14] sm:$0xff] %v265
      %v267 = vpack.c.bf16 %v265, %v265
      %v268 = vld [vmem:[#allocation9] sm:$0xff]
      %v269 = vld [vmem:[#allocation9 + $0x8] sm:$0xff]
      %v270 = vld [vmem:[#allocation9 + $0x10] sm:$0xff]
      %v271 = vld [vmem:[#allocation9 + $0x18] sm:$0xff]
      %v272 = vld [vmem:[#allocation9 + $0x20] sm:$0xff]
      %v273 = vld [vmem:[#allocation9 + $0x28] sm:$0xff]
      %v274 = vld [vmem:[#allocation9 + $0x30] sm:$0xff]
      %v275 = vld [vmem:[#allocation9 + $0x38] sm:$0xff]
      %v276 = vld [vmem:[#allocation9 + $0x40] sm:$0xff]
      %v277 = vld [vmem:[#allocation9 + $0x48] sm:$0xff]
      %v278 = vld [vmem:[#allocation9 + $0x50] sm:$0xff]
      %v279 = vld [vmem:[#allocation9 + $0x58] sm:$0xff]
      %v280 = vld [vmem:[#allocation9 + $0x60] sm:$0xff]
      %v281 = vld [vmem:[#allocation9 + $0x68] sm:$0xff]
      %v282 = vld [vmem:[#allocation9 + $0x70] sm:$0xff]
      %v283 = vld [vmem:[#allocation9 + $0x78] sm:$0xff]
      %v284 = vld [vmem:[%s4] sm:$0x3]
      %v286 = vperm.slane %v284, 0
      %v287 = vperm.slane %v284, 1
      %v306 = vunpack.c.l.b16 %v268
      %v307 = vunpack.c.h.b16 %v268
      %v308 = vunpack.c.l.b16 %v269
      %v309 = vunpack.c.h.b16 %v269
      %v310 = vunpack.c.l.b16 %v270
      %v311 = vunpack.c.h.b16 %v270
      %v312 = vunpack.c.l.b16 %v271
      %v313 = vunpack.c.h.b16 %v271
      %v314 = vunpack.c.l.b16 %v272
      %v315 = vunpack.c.h.b16 %v272
      %v316 = vunpack.c.l.b16 %v273
      %v317 = vunpack.c.h.b16 %v273
      %v318 = vunpack.c.l.b16 %v274
      %v319 = vunpack.c.h.b16 %v274
      %v320 = vunpack.c.l.b16 %v275
      %v321 = vunpack.c.h.b16 %v275
      %v322 = vunpack.c.l.b16 %v276
      %v323 = vunpack.c.h.b16 %v276
      %v324 = vunpack.c.l.b16 %v277
      %v325 = vunpack.c.h.b16 %v277
      %v326 = vunpack.c.l.b16 %v278
      %v327 = vunpack.c.h.b16 %v278
      %v328 = vunpack.c.l.b16 %v279
      %v329 = vunpack.c.h.b16 %v279
      %v330 = vunpack.c.l.b16 %v280
      %v331 = vunpack.c.h.b16 %v280
      %v332 = vunpack.c.l.b16 %v281
      %v333 = vunpack.c.h.b16 %v281
      %v334 = vunpack.c.l.b16 %v282
      %v335 = vunpack.c.h.b16 %v282
      %v336 = vunpack.c.l.b16 %v283
      %v337 = vunpack.c.h.b16 %v283
      %v338 = vpack.c.b16 %v308, %v306
      %v339 = vpack.c.b16 %v309, %v307
      %v340 = vpack.c.b16 %v312, %v310
      %v341 = vpack.c.b16 %v313, %v311
      %v342 = vpack.c.b16 %v316, %v314
      %v343 = vpack.c.b16 %v317, %v315
      %v344 = vpack.c.b16 %v320, %v318
      %v345 = vpack.c.b16 %v321, %v319
      %v346 = vpack.c.b16 %v324, %v322
      %v347 = vpack.c.b16 %v325, %v323
      %v348 = vpack.c.b16 %v328, %v326
      %v349 = vpack.c.b16 %v329, %v327
      %v350 = vpack.c.b16 %v332, %v330
      %v351 = vpack.c.b16 %v333, %v331
      %v352 = vpack.c.b16 %v336, %v334
      %v353 = vpack.c.b16 %v337, %v335
      %370 = vmatpush.bf16.msra.mxu0 %v352
      %371 = vmatpush.bf16.msra.mxu0 %v350
      %372 = vmatpush.bf16.msra.mxu0 %v348
      %373 = vmatpush.bf16.msra.mxu0 %v346
      %374 = vmatpush.bf16.msra.mxu0 %v344
      %375 = vmatpush.bf16.msra.mxu0 %v342
      %376 = vmatpush.bf16.msra.mxu0 %v340
      %377 = vmatpush.bf16.msra.mxu0 %v338
      %378 = vmatmul.bf16.gmra.mxu0 %v267
      %v379 = vpop.f32.mrf.mxu0
      %v380 = vadd.f32 %v286, %v379
      %v381 = vpop.f32.mrf.mxu0
      %382 = vdwg.mxu0
      %383 = vmatpush.bf16.msra.mxu0 %v353
      %384 = vmatpush.bf16.msra.mxu0 %v351
      %385 = vmatpush.bf16.msra.mxu0 %v349
      %386 = vmatpush.bf16.msra.mxu0 %v347
      %387 = vmatpush.bf16.msra.mxu0 %v345
      %388 = vmatpush.bf16.msra.mxu0 %v343
      %389 = vmatpush.bf16.msra.mxu0 %v341
      %390 = vmatpush.bf16.msra.mxu0 %v339
      %391 = vmatmul.bf16.gmra.mxu0 %v267
      %v392 = vpop.f32.mrf.mxu0
      %v393 = vadd.f32 %v287, %v392
      %v394 = vpop.f32.mrf.mxu0
      %395 = vdwg.mxu0
      %v396 = vlaneseq
      %v397 = vshrl.u32 %v396, 7
      %vm398 = vcmp.lt.s32.totalorder %v397, 2
      %v399 = vsel %vm398, 1, 0
      %v400 = vcvt.s32.f32 %v399
      %v401 = vmul.f32 %v380, %v400
      %v402 = vmul.f32 %v393, %v400
      %v403 = vrot.slane %v401, 4
      %v404 = vadd.f32 %v401, %v403
      %v405 = vrot.slane %v404, 2
      %v406 = vadd.f32 %v404, %v405
      %v407 = vrot.slane %v406, 1
      %v408 = vadd.f32 %v406, %v407
      %v409 = vrot.slane %v402, 4
      %v410 = vadd.f32 %v402, %v409
      %v411 = vrot.slane %v410, 2
      %v412 = vadd.f32 %v410, %v411
      %v413 = vrot.slane %v412, 1
      %v414 = vadd.f32 %v412, %v413
      %v415 = vmul.f32 %v408, 0.5
      %v416 = vmul.f32 %v414, 0.5
      %v417 = vsub.f32 %v380, %v415
      %v418 = vsub.f32 %v393, %v416
      %v419 = vmul.f32 %v417, %v400
      %v420 = vmul.f32 %v418, %v400
      %v421 = vmul.f32 %v419, %v419
      %v422 = vmul.f32 %v420, %v420
      %v423 = vrot.slane %v421, 4
      %v424 = vadd.f32 %v421, %v423
      %v425 = vrot.slane %v424, 2
      %v426 = vadd.f32 %v424, %v425
      %v427 = vrot.slane %v426, 1
      %v428 = vadd.f32 %v426, %v427
      %v429 = vrot.slane %v422, 4
      %v430 = vadd.f32 %v422, %v429
      %v431 = vrot.slane %v430, 2
      %v432 = vadd.f32 %v430, %v431
      %v433 = vrot.slane %v432, 1
      %v434 = vadd.f32 %v432, %v433
      %v435 = vmul.f32 %v428, 0.5
      %v436 = vmul.f32 %v434, 0.5
      %v437 = vadd.f32 %v435, 1e-05
      %v438 = vadd.f32 %v436, 1e-05
      %v439 = vrsqrt.pop %v437
      %v440 = vmul.f32 %v439, %v437
      %v441 = vmul.f32 %v440, %v439
      %v442 = vmul.f32 0.5, %v441
      %v443 = vsub.f32 1.5, %v442
      %v444 = vmul.f32 %v439, %v443
      %vm445 = vweird.f32 %v437
      %vm446 = vweird.f32 %v439
      %vm447 = vmor %vm445, %vm446
      %v448 = vsel %vm447, %v439, %v444
      %v449 = vrsqrt.pop %v438
      %v450 = vmul.f32 %v449, %v438
      %v451 = vmul.f32 %v450, %v449
      %v452 = vmul.f32 0.5, %v451
      %v453 = vsub.f32 1.5, %v452
      %v454 = vmul.f32 %v449, %v453
      %vm455 = vweird.f32 %v438
      %vm456 = vweird.f32 %v449
      %vm457 = vmor %vm455, %vm456
      %v458 = vsel %vm457, %v449, %v454
      %v459 = vmul.f32 %v417, %v448
      %v460 = vmul.f32 %v418, %v458
      %v461 = vld [vmem:[%s5] sm:$0x3]
      %v463 = vperm.slane %v461, 0
      %v464 = vperm.slane %v461, 1
      %v467 = vmul.f32 %v459, %v463
      %v468 = vmul.f32 %v460, %v464
      %v469 = vld [vmem:[#allocation11] sm:$0x3]
      %v471 = vperm.slane %v469, 0
      %v472 = vperm.slane %v469, 1
      %v475 = vadd.f32 %v467, %v471
      %v476 = vadd.f32 %v468, %v472
      %477 = vst [vmem:[#allocation15] sm:$0xff] %v475
      %478 = vst [vmem:[#allocation15 + $0x8] sm:$0xff] %v476
      %v479 = vld [vmem:[#allocation12] sm:$0xff]
      %v480 = vld [vmem:[#allocation12 + $0x8] sm:$0xff]
      %v481 = vld [vmem:[#allocation12 + $0x10] sm:$0xff]
      %v482 = vld [vmem:[#allocation12 + $0x18] sm:$0xff]
      %v483 = vld [vmem:[#allocation12 + $0x20] sm:$0xff]
      %v484 = vld [vmem:[#allocation12 + $0x28] sm:$0xff]
      %v485 = vld [vmem:[#allocation12 + $0x30] sm:$0xff]
      %v486 = vld [vmem:[#allocation12 + $0x38] sm:$0xff]
      %v487 = vld [vmem:[#allocation12 + $0x40] sm:$0xff]
      %v488 = vld [vmem:[#allocation12 + $0x48] sm:$0xff]
      %v489 = vld [vmem:[#allocation12 + $0x50] sm:$0xff]
      %v490 = vld [vmem:[#allocation12 + $0x58] sm:$0xff]
      %v491 = vld [vmem:[#allocation12 + $0x60] sm:$0xff]
      %v492 = vld [vmem:[#allocation12 + $0x68] sm:$0xff]
      %v493 = vld [vmem:[#allocation12 + $0x70] sm:$0xff]
      %v494 = vld [vmem:[#allocation12 + $0x78] sm:$0xff]
      %v495 = vld [vmem:[#allocation12 + $0x80] sm:$0xff]
      %v496 = vld [vmem:[#allocation12 + $0x88] sm:$0xff]
      %v497 = vld [vmem:[#allocation12 + $0x90] sm:$0xff]
      %v498 = vld [vmem:[#allocation12 + $0x98] sm:$0xff]
      %v499 = vld [vmem:[#allocation12 + $0xa0] sm:$0xff]
      %v500 = vld [vmem:[#allocation12 + $0xa8] sm:$0xff]
      %v501 = vld [vmem:[#allocation12 + $0xb0] sm:$0xff]
      %v502 = vld [vmem:[#allocation12 + $0xb8] sm:$0xff]
      %v503 = vld [vmem:[#allocation12 + $0xc0] sm:$0xff]
      %v504 = vld [vmem:[#allocation12 + $0xc8] sm:$0xff]
      %v505 = vld [vmem:[#allocation12 + $0xd0] sm:$0xff]
      %v506 = vld [vmem:[#allocation12 + $0xd8] sm:$0xff]
      %v507 = vld [vmem:[#allocation12 + $0xe0] sm:$0xff]
      %v508 = vld [vmem:[#allocation12 + $0xe8] sm:$0xff]
      %v509 = vld [vmem:[#allocation12 + $0xf0] sm:$0xff]
      %v510 = vld [vmem:[#allocation12 + $0xf8] sm:$0xff]
      %v511 = vmul.f32 %v479, %v479
      %v512 = vmul.f32 %v480, %v480
      %v513 = vmul.f32 %v481, %v481
      %v514 = vmul.f32 %v482, %v482
      %v515 = vmul.f32 %v483, %v483
      %v516 = vmul.f32 %v484, %v484
      %v517 = vmul.f32 %v485, %v485
      %v518 = vmul.f32 %v486, %v486
      %v519 = vmul.f32 %v487, %v487
      %v520 = vmul.f32 %v488, %v488
      %v521 = vmul.f32 %v489, %v489
      %v522 = vmul.f32 %v490, %v490
      %v523 = vmul.f32 %v491, %v491
      %v524 = vmul.f32 %v492, %v492
      %v525 = vmul.f32 %v493, %v493
      %v526 = vmul.f32 %v494, %v494
      %v527 = vmul.f32 %v495, %v495
      %v528 = vmul.f32 %v496, %v496
      %v529 = vmul.f32 %v497, %v497
      %v530 = vmul.f32 %v498, %v498
      %v531 = vmul.f32 %v499, %v499
      %v532 = vmul.f32 %v500, %v500
      %v533 = vmul.f32 %v501, %v501
      %v534 = vmul.f32 %v502, %v502
      %v535 = vmul.f32 %v503, %v503
      %v536 = vmul.f32 %v504, %v504
      %v537 = vmul.f32 %v505, %v505
      %v538 = vmul.f32 %v506, %v506
      %v539 = vmul.f32 %v507, %v507
      %v540 = vmul.f32 %v508, %v508
      %v541 = vmul.f32 %v509, %v509
      %v542 = vmul.f32 %v510, %v510
      %v543 = vadd.f32 %v511, %v512
      %v544 = vadd.f32 %v543, %v513
      %v545 = vadd.f32 %v544, %v514
      %v546 = vadd.f32 %v545, %v515
      %v547 = vadd.f32 %v546, %v516
      %v548 = vadd.f32 %v547, %v517
      %v549 = vadd.f32 %v548, %v518
      %v550 = vadd.f32 %v549, %v519
      %v551 = vadd.f32 %v550, %v520
      %v552 = vadd.f32 %v551, %v521
      %v553 = vadd.f32 %v552, %v522
      %v554 = vadd.f32 %v553, %v523
      %v555 = vadd.f32 %v554, %v524
      %v556 = vadd.f32 %v555, %v525
      %v557 = vadd.f32 %v556, %v526
      %v558 = vadd.f32 %v557, %v527
      %v559 = vadd.f32 %v558, %v528
      %v560 = vadd.f32 %v559, %v529
      %v561 = vadd.f32 %v560, %v530
      %v562 = vadd.f32 %v561, %v531
      %v563 = vadd.f32 %v562, %v532
      %v564 = vadd.f32 %v563, %v533
      %v565 = vadd.f32 %v564, %v534
      %v566 = vadd.f32 %v565, %v535
      %v567 = vadd.f32 %v566, %v536
      %v568 = vadd.f32 %v567, %v537
      %v569 = vadd.f32 %v568, %v538
      %v570 = vadd.f32 %v569, %v539
      %v571 = vadd.f32 %v570, %v540
      %v572 = vadd.f32 %v571, %v541
      %v573 = vadd.f32 %v572, %v542
      %v574 = vrot.slane %v573, 4
      %v575 = vadd.f32 %v573, %v574
      %v576 = vrot.slane %v575, 2
      %v577 = vadd.f32 %v575, %v576
      %v578 = vrot.slane %v577, 1
      %v579 = vadd.f32 %v577, %v578
      %v580 = vadd.f32 %v579, 1e-20
      %v581 = vrsqrt.pop %v580
      %v582 = vmul.f32 %v581, %v580
      %v583 = vmul.f32 %v582, %v581
      %v584 = vmul.f32 0.5, %v583
      %v585 = vsub.f32 1.5, %v584
      %v586 = vmul.f32 %v581, %v585
      %vm587 = vweird.f32 %v580
      %vm588 = vweird.f32 %v581
      %vm589 = vmor %vm587, %vm588
      %v590 = vsel %vm589, %v581, %v586
      %v591 = vld [vmem:[%s8] sm:$0x1]
      %v592 = vmul.f32 %v591, %v590
      %v594 = vperm.slane %v592, 0
      %v596 = vmul.f32 %v479, %v594
      %v597 = vmul.f32 %v480, %v594
      %v598 = vmul.f32 %v481, %v594
      %v599 = vmul.f32 %v482, %v594
      %v600 = vmul.f32 %v483, %v594
      %v601 = vmul.f32 %v484, %v594
      %v602 = vmul.f32 %v485, %v594
      %v603 = vmul.f32 %v486, %v594
      %v604 = vmul.f32 %v487, %v594
      %v605 = vmul.f32 %v488, %v594
      %v606 = vmul.f32 %v489, %v594
      %v607 = vmul.f32 %v490, %v594
      %v608 = vmul.f32 %v491, %v594
      %v609 = vmul.f32 %v492, %v594
      %v610 = vmul.f32 %v493, %v594
      %v611 = vmul.f32 %v494, %v594
      %v612 = vmul.f32 %v495, %v594
      %v613 = vmul.f32 %v496, %v594
      %v614 = vmul.f32 %v497, %v594
      %v615 = vmul.f32 %v498, %v594
      %v616 = vmul.f32 %v499, %v594
      %v617 = vmul.f32 %v500, %v594
      %v618 = vmul.f32 %v501, %v594
      %v619 = vmul.f32 %v502, %v594
      %v620 = vmul.f32 %v503, %v594
      %v621 = vmul.f32 %v504, %v594
      %v622 = vmul.f32 %v505, %v594
      %v623 = vmul.f32 %v506, %v594
      %v624 = vmul.f32 %v507, %v594
      %v625 = vmul.f32 %v508, %v594
      %v626 = vmul.f32 %v509, %v594
      %v627 = vmul.f32 %v510, %v594
      %v628 = vld [vmem:[%s9] sm:$0x1]
      %v630 = vperm.slane %v628, 0
      %632 = vmatpush.msra.mxu0 %v611
      %633 = vmatpush.msra.mxu0 %v610
      %634 = vmatpush.msra.mxu0 %v609
      %635 = vmatpush.msra.mxu0 %v608
      %636 = vmatpush.msra.mxu0 %v607
      %637 = vmatpush.msra.mxu0 %v606
      %638 = vmatpush.msra.mxu0 %v605
      %639 = vmatpush.msra.mxu0 %v604
      %640 = vmatpush.msra.mxu0 %v603
      %641 = vmatpush.msra.mxu0 %v602
      %642 = vmatpush.msra.mxu0 %v601
      %643 = vmatpush.msra.mxu0 %v600
      %644 = vmatpush.msra.mxu0 %v599
      %645 = vmatpush.msra.mxu0 %v598
      %646 = vmatpush.msra.mxu0 %v597
      %647 = vmatpush.msra.mxu0 %v596
      %648 = vmatmul.f32.gmra.mxu0 %v475
      %v649 = vpop.f32.mrf.mxu0
      %v650 = vadd.f32 %v630, %v649
      %651 = vdwg.mxu0
      %652 = vmatpush.msra.mxu0 %v627
      %653 = vmatpush.msra.mxu0 %v626
      %654 = vmatpush.msra.mxu0 %v625
      %655 = vmatpush.msra.mxu0 %v624
      %656 = vmatpush.msra.mxu0 %v623
      %657 = vmatpush.msra.mxu0 %v622
      %658 = vmatpush.msra.mxu0 %v621
      %659 = vmatpush.msra.mxu0 %v620
      %660 = vmatpush.msra.mxu0 %v619
      %661 = vmatpush.msra.mxu0 %v618
      %662 = vmatpush.msra.mxu0 %v617
      %663 = vmatpush.msra.mxu0 %v616
      %664 = vmatpush.msra.mxu0 %v615
      %665 = vmatpush.msra.mxu0 %v614
      %666 = vmatpush.msra.mxu0 %v613
      %667 = vmatpush.msra.mxu0 %v612
      %668 = vmatmul.f32.gmra.mxu0 %v476
      %v669 = vpop.f32.mrf.mxu0
      %v670 = vadd.f32 %v650, %v669
      %671 = vdwg.mxu0
      %672 = vst [vmem:[#allocation17] sm:$0xff] %v670
    $region73: #{tpu_custom_call.1} parent=1 // pred_fallthru
      _
    // Predicated region
    $region74: #{tpu_custom_call.1} parent=1 // pred_check
      _
    $region75: #{tpu_custom_call.1} parent=1 // pred_check_branch
      %674 = sbr.rel (0) target = $region77
    $region76: #{tpu_custom_call.1} parent=1 // pred_region
      %676 = vsyncadd [#allocation5], 0
      %s678 = sshll.u32 [#allocation14], 4
      %s679 = int_to_ptr.vmem [resolvable:$true] %s678
      %s680 = sshll.u32 %s10, 4
      %s681 = int_to_ptr.hbm [resolvable:$true] %s680
      %683 = dma.vmem_to_hbm [thread:$0]  %s679, 128, %s681, [#allocation5]
    $region77: #{tpu_custom_call.1} parent=1 // pred_fallthru
      _
    // Predicated region
    $region78: #{tpu_custom_call.1} parent=1 // pred_check
      _
    $region79: #{tpu_custom_call.1} parent=1 // pred_check_branch
      %685 = sbr.rel (0) target = $region81
    $region80: #{tpu_custom_call.1} parent=1 // pred_region
      %687 = vsyncadd [#allocation16], 0
      %s689 = sshll.u32 [#allocation15], 4
      %s690 = int_to_ptr.vmem [resolvable:$true] %s689
      %s691 = sshll.u32 %s11, 4
      %s692 = int_to_ptr.hbm [resolvable:$true] %s691
      %694 = dma.vmem_to_hbm [thread:$0]  %s690, 256, %s692, [#allocation16]
    $region81: #{tpu_custom_call.1} parent=1 // pred_fallthru
      _
    // Predicated region
    $region82: #{tpu_custom_call.1} parent=1 // pred_check
      _
    $region83: #{tpu_custom_call.1} parent=1 // pred_check_branch
      %696 = sbr.rel (0) target = $region85
    $region84: #{tpu_custom_call.1} parent=1 // pred_region
      %698 = vsyncadd [#allocation16], 0
      %s700 = sshll.u32 [#allocation17], 4
      %s701 = int_to_ptr.vmem [resolvable:$true] %s700
      %s702 = sshll.u32 %s12, 4
      %s703 = int_to_ptr.hbm [resolvable:$true] %s702
      %705 = dma.vmem_to_hbm [thread:$0]  %s701, 128, %s703, [#allocation16]
    $region85: #{tpu_custom_call.1} parent=1 // pred_fallthru
      _
    // Predicated region
    $region86: #{tpu_custom_call.1} parent=1 // pred_check
      _
    $region87: #{tpu_custom_call.1} parent=1 // pred_check_branch
      %707 = sbr.rel (0) target = $region89
    $region88: #{tpu_custom_call.1} parent=1 // pred_region
      %709 = dma.done [#allocation5], 128
    $region89: #{tpu_custom_call.1} parent=1 // pred_fallthru
      _
    // Predicated region
    $region90: #{tpu_custom_call.1} parent=1 // pred_check
      _
    $region91: #{tpu_custom_call.1} parent=1 // pred_check_branch
      %711 = sbr.rel (0) target = $region93
    $region92: #{tpu_custom_call.1} parent=1 // pred_region
      %713 = dma.done [#allocation16], 256
    $region93: #{tpu_custom_call.1} parent=1 // pred_fallthru
      _
    // Predicated region
    $region94: #{tpu_custom_call.1} parent=1 // pred_check
      _
    $region95: #{tpu_custom_call.1} parent=1 // pred_check_branch
      %715 = sbr.rel (0) target = $region97
    $region96: #{tpu_custom_call.1} parent=1 // pred_region
      %717 = dma.done [#allocation16], 128
    $region97: #{tpu_custom_call.1} parent=1 // pred_fallthru
      _
    %718 = vsyncpa [#allocation4], 1
    %719 = vsyncpa [#allocation7], 1
    %720 = vsyncpa [#allocation10], 1
    %721 = vsyncpa [#allocation13], 1
    %722 = vsyncpa [#allocation5], 1
    %723 = vsyncpa [#allocation16], 1

</llo_original>
